<compile_context>
chip_gen: v5e
topology: v5e:2x2
jax: 0.10.0
libtpu: 0.0.40
codegen_flags: <defaults>
</compile_context>

<pallas_src>
import jax
import jax.numpy as jnp
from jax.experimental import pallas as pl
from jax.experimental.pallas import tpu as pltpu


def _round_up(x, m):
    return ((x + m - 1) // m) * m


def _early_fusion_kernel(ehr_ref, cxr_ref, dn_ref, w_ref, b_ref, out_ref,
                         feat_ref):
    # ehr_ref : (B_TILE, D_ehr)        bf16
    # cxr_ref : (B_TILE, S_cxr, D_cxr) bf16
    # dn_ref  : (B_TILE, S_dn,  D_dn)  bf16
    # w_ref   : (K_pad, C_pad)         bf16  (mean scale pre-folded)
    # b_ref   : (1, C_pad)             f32
    # out_ref : (B_TILE, C_pad)        f32
    # feat_ref: (B_TILE, K_pad)        bf16 VMEM scratch (packed features)

    d_ehr = ehr_ref.shape[1]
    d_cxr = cxr_ref.shape[2]
    d_dn = dn_ref.shape[2]
    d_total = d_ehr + d_cxr + d_dn

    # Sum-pool token sequences with f32 accumulation; the 1/S mean scale is
    # folded into w_ref, so no in-kernel scale is needed.
    cxr_pool = jnp.sum(cxr_ref[...].astype(jnp.float32), axis=1)
    dn_pool = jnp.sum(dn_ref[...].astype(jnp.float32), axis=1)

    # Pack [ehr | cxr_pool | dn_pool | 0-pad] into one lane-aligned bf16 tile.
    # (Zeroing the whole scratch each step keeps the pad lanes clean and is
    #  negligible next to the HBM-bound sequence reads.)
    feat_ref[...] = jnp.zeros_like(feat_ref)
    feat_ref[:, 0:d_ehr] = ehr_ref[...]
    feat_ref[:, d_ehr:d_ehr + d_cxr] = cxr_pool.astype(feat_ref.dtype)
    feat_ref[:, d_ehr + d_cxr:d_total] = dn_pool.astype(feat_ref.dtype)

    # One fused MXU matmul (K = K_pad) with f32 accumulation + bias epilogue.
    acc = jnp.dot(feat_ref[...], w_ref[...],
                  preferred_element_type=jnp.float32)
    out_ref[...] = acc + b_ref[...]


def early_fusion(ehr_feats, cxr_feats_seq, dn_feats_seq, cls_w, cls_b,
                 use_cls_token="mean", compute_dtype=jnp.bfloat16,
                 max_b_tile=128):
    """Pallas implementation of EarlyFusion.forward (post frozen encoders).

    ehr_feats     : [B, D_ehr]
    cxr_feats_seq : [B, S_cxr, D_cxr]  (token sequence)
    dn_feats_seq  : [B, S_dn,  D_dn]   (token sequence)
    cls_w         : [total_feats_dim, C]  (Classifier weight, already W^T)
    cls_b         : [C]
    """
    B, D_ehr = ehr_feats.shape

    # 'cls' branch: keep only token 0 (tiny [B,1,D] slice); the in-kernel sum
    # over a length-1 axis is then the identity and the folded scale is 1.
    if use_cls_token == "cls":
        cxr_feats_seq = cxr_feats_seq[:, :1, :]

    _, S_cxr, D_cxr = cxr_feats_seq.shape
    _, S_dn, D_dn = dn_feats_seq.shape
    C = cls_w.shape[1]
    D_total = D_ehr + D_cxr + D_dn

    # Tiling: batch tile is a multiple of 16 (bf16 sublane packing) capped at
    # max_b_tile; classes and the packed-feature K axis are lane-padded to 128.
    B_TILE = min(max_b_tile, _round_up(B, 16))
    B_pad = _round_up(B, B_TILE)
    C_pad = _round_up(max(C, 128), 128)
    K_pad = _round_up(D_total, 128)

    # Fold the mean scale into the per-modality weight slices and concatenate
    # into one (K_pad, C_pad) classifier weight (zero pad rows/cols).
    w_ehr = cls_w[:D_ehr]
    w_cxr = cls_w[D_ehr:D_ehr + D_cxr] * (1.0 / S_cxr)
    w_dn = cls_w[D_ehr + D_cxr:D_total] * (1.0 / S_dn)
    w_packed = jnp.zeros((K_pad, C_pad), jnp.float32)
    w_packed = w_packed.at[:D_ehr, :C].set(w_ehr)
    w_packed = w_packed.at[D_ehr:D_ehr + D_cxr, :C].set(w_cxr)
    w_packed = w_packed.at[D_ehr + D_cxr:D_total, :C].set(w_dn)
    w_packed = w_packed.astype(compute_dtype)

    b_packed = jnp.zeros((1, C_pad), jnp.float32).at[0, :C].set(
        cls_b.astype(jnp.float32))

    def _pad_batch(a):
        if B_pad == B:
            return a
        widths = [(0, B_pad - B)] + [(0, 0)] * (a.ndim - 1)
        return jnp.pad(a, widths)

    ehr_b = _pad_batch(ehr_feats).astype(compute_dtype)
    cxr_b = _pad_batch(cxr_feats_seq).astype(compute_dtype)
    dn_b = _pad_batch(dn_feats_seq).astype(compute_dtype)

    grid = (B_pad // B_TILE,)

    bytes_accessed = int(
        B_pad * (D_ehr + S_cxr * D_cxr + S_dn * D_dn) * 2   # bf16 inputs
        + K_pad * C_pad * 2 + C_pad * 4                      # weights + bias
        + B_pad * C_pad * 4)                                 # f32 output
    cost = pl.CostEstimate(
        flops=int(2 * B_pad * K_pad * C_pad
                  + B_pad * (S_cxr * D_cxr + S_dn * D_dn)),
        transcendentals=0,
        bytes_accessed=bytes_accessed)

    out = pl.pallas_call(
        _early_fusion_kernel,
        out_shape=jax.ShapeDtypeStruct((B_pad, C_pad), jnp.float32),
        grid_spec=pltpu.PrefetchScalarGridSpec(
            num_scalar_prefetch=0,
            grid=grid,
            in_specs=[
                pl.BlockSpec((B_TILE, D_ehr), lambda i: (i, 0)),
                pl.BlockSpec((B_TILE, S_cxr, D_cxr), lambda i: (i, 0, 0)),
                pl.BlockSpec((B_TILE, S_dn, D_dn), lambda i: (i, 0, 0)),
                # Weight / bias: constant index map -> stay resident in VMEM.
                pl.BlockSpec((K_pad, C_pad), lambda i: (0, 0)),
                pl.BlockSpec((1, C_pad), lambda i: (0, 0)),
            ],
            out_specs=pl.BlockSpec((B_TILE, C_pad), lambda i: (i, 0)),
            scratch_shapes=[pltpu.VMEM((B_TILE, K_pad), compute_dtype)],
        ),
        compiler_params=pltpu.CompilerParams(
            dimension_semantics=("parallel",),
            vmem_limit_bytes=32 * 1024 * 1024),
        cost_estimate=cost,
    )(ehr_b, cxr_b, dn_b, w_packed, b_packed)

    out = out[:B, :C]
    return {"early": out, "unified": out}


if __name__ == "__main__":
    # Small shapes implied by the forward:
    #   B = 2, S_cxr = S_dn = 8 (token sequences),
    #   D_ehr = D_cxr = D_dn = 32, total_feats_dim = 96, num_classes C = 4.
    B, S_CXR, S_DN = 2, 8, 8
    D_EHR, D_CXR, D_DN = 32, 32, 32
    TOTAL_D = D_EHR + D_CXR + D_DN
    C = 4
    USE_CLS_TOKEN = "mean"   # exercises the cxr_feats.mean(dim=1) branch

    key = jax.random.PRNGKey(0)
    k_ehr, k_cxr, k_dn, k_w, k_b = jax.random.split(key, 5)

    # Synthetic frozen-encoder outputs and deterministic classifier params.
    ehr_feats = jax.random.normal(k_ehr, (B, D_EHR), dtype=jnp.float32)
    cxr_feats_seq = jax.random.normal(k_cxr, (B, S_CXR, D_CXR),
                                      dtype=jnp.float32)
    dn_feats_seq = jax.random.normal(k_dn, (B, S_DN, D_DN), dtype=jnp.float32)
    cls_w = jax.random.normal(k_w, (TOTAL_D, C), dtype=jnp.float32) * 0.05
    cls_b = jax.random.normal(k_b, (C,), dtype=jnp.float32) * 0.01

    out = early_fusion(ehr_feats, cxr_feats_seq, dn_feats_seq, cls_w, cls_b,
                       use_cls_token=USE_CLS_TOKEN)
    result = jax.block_until_ready(out["early"])

    # Plain-JAX f32 reference of the original forward (mean pooling branch).
    cxr_pool_ref = cxr_feats_seq.mean(axis=1)
    dn_pool_ref = dn_feats_seq.mean(axis=1)
    combined = jnp.concatenate([ehr_feats, cxr_pool_ref, dn_pool_ref], axis=1)
    ref = combined @ cls_w + cls_b

    assert result.shape == (B, C)
    assert out["unified"] is out["early"]
    # bf16 MXU inputs with f32 accumulation -> compare at bf16-level tolerance.
    assert jnp.allclose(result, ref, atol=3e-2, rtol=3e-2), (
        jnp.max(jnp.abs(result - ref)))

    print("KERNEL_OK")
</pallas_src>

<mosaic_0001>
module attributes {stable_mosaic.version = 11 : i64} {
  func.func @_early_fusion_kernel(%arg0: i32, %arg1: memref<16x32xbf16, #tpu.memory_space<vmem>>, %arg2: memref<16x8x32xbf16, #tpu.memory_space<vmem>>, %arg3: memref<16x8x32xbf16, #tpu.memory_space<vmem>>, %arg4: memref<128x128xbf16, #tpu.memory_space<vmem>>, %arg5: memref<1x128xf32, #tpu.memory_space<vmem>>, %arg6: memref<16x128xf32, #tpu.memory_space<vmem>>, %arg7: memref<16x128xbf16, #tpu.memory_space<vmem>>) attributes {dimension_semantics = [#tpu.dimension_semantics<parallel>], iteration_bounds = array<i64: 1>, scalar_prefetch = 0 : i64, scratch_operands = 1 : i64, tpu.core_type = #tpu.core_type<tc>, window_params = [{transform_indices = @transform_0, window_bounds = array<i64: 16, 32>}, {transform_indices = @transform_1, window_bounds = array<i64: 16, 8, 32>}, {transform_indices = @transform_2, window_bounds = array<i64: 16, 8, 32>}, {pipeline_mode = #tpu.pipeline_mode<synchronous>, transform_indices = @transform_3, window_bounds = array<i64: 128, 128>}, {pipeline_mode = #tpu.pipeline_mode<synchronous>, transform_indices = @transform_4, window_bounds = array<i64: 1, 128>}, {transform_indices = @transform_5, window_bounds = array<i64: 16, 128>}]} {
    %c0 = arith.constant 0 : index
    %c0_0 = arith.constant 0 : index
    %c0_1 = arith.constant 0 : index
    %0 = vector.load %arg2[%c0, %c0_0, %c0_1] : memref<16x8x32xbf16, #tpu.memory_space<vmem>>, vector<16x8x32xbf16>
    %1 = arith.extf %0 : vector<16x8x32xbf16> to vector<16x8x32xf32>
    %cst = arith.constant dense<0.000000e+00> : vector<16x32xf32>
    %2 = vector.multi_reduction <add>, %1, %cst [1] : vector<16x8x32xf32> to vector<16x32xf32>
    %c0_2 = arith.constant 0 : index
    %c0_3 = arith.constant 0 : index
    %c0_4 = arith.constant 0 : index
    %3 = vector.load %arg3[%c0_2, %c0_3, %c0_4] : memref<16x8x32xbf16, #tpu.memory_space<vmem>>, vector<16x8x32xbf16>
    %4 = arith.extf %3 : vector<16x8x32xbf16> to vector<16x8x32xf32>
    %cst_5 = arith.constant dense<0.000000e+00> : vector<16x32xf32>
    %5 = vector.multi_reduction <add>, %4, %cst_5 [1] : vector<16x8x32xf32> to vector<16x32xf32>
    %cst_6 = arith.constant 0.000000e+00 : bf16
    %6 = vector.broadcast %cst_6 : bf16 to vector<16x128xbf16>
    %c0_7 = arith.constant 0 : index
    %c0_8 = arith.constant 0 : index
    %7 = vector.load %arg7[%c0_7, %c0_8] : memref<16x128xbf16, #tpu.memory_space<vmem>>, vector<16x128xbf16>
    tpu.vector_store %arg7[%c0_7, %c0_8], %6 {strides = array<i32>} : memref<16x128xbf16, #tpu.memory_space<vmem>>, vector<16x128xbf16>,
    %c0_9 = arith.constant 0 : index
    %c0_10 = arith.constant 0 : index
    %8 = vector.load %arg1[%c0_9, %c0_10] : memref<16x32xbf16, #tpu.memory_space<vmem>>, vector<16x32xbf16>
    %c0_11 = arith.constant 0 : index
    %c0_12 = arith.constant 0 : index
    %9 = vector.load %arg7[%c0_11, %c0_12] : memref<16x128xbf16, #tpu.memory_space<vmem>>, vector<16x32xbf16>
    tpu.vector_store %arg7[%c0_11, %c0_12], %8 {strides = array<i32>} : memref<16x128xbf16, #tpu.memory_space<vmem>>, vector<16x32xbf16>,
    %10 = arith.truncf %2 : vector<16x32xf32> to vector<16x32xbf16>
    %c0_13 = arith.constant 0 : index
    %c32 = arith.constant 32 : index
    %11 = vector.load %arg7[%c0_13, %c32] : memref<16x128xbf16, #tpu.memory_space<vmem>>, vector<16x32xbf16>
    tpu.vector_store %arg7[%c0_13, %c32], %10 {strides = array<i32>} : memref<16x128xbf16, #tpu.memory_space<vmem>>, vector<16x32xbf16>,
    %12 = arith.truncf %5 : vector<16x32xf32> to vector<16x32xbf16>
    %c0_14 = arith.constant 0 : index
    %c64 = arith.constant 64 : index
    %13 = vector.load %arg7[%c0_14, %c64] : memref<16x128xbf16, #tpu.memory_space<vmem>>, vector<16x32xbf16>
    tpu.vector_store %arg7[%c0_14, %c64], %12 {strides = array<i32>} : memref<16x128xbf16, #tpu.memory_space<vmem>>, vector<16x32xbf16>,
    %c0_15 = arith.constant 0 : index
    %c0_16 = arith.constant 0 : index
    %14 = vector.load %arg7[%c0_15, %c0_16] : memref<16x128xbf16, #tpu.memory_space<vmem>>, vector<16x128xbf16>
    %c0_17 = arith.constant 0 : index
    %c0_18 = arith.constant 0 : index
    %15 = vector.load %arg4[%c0_17, %c0_18] : memref<128x128xbf16, #tpu.memory_space<vmem>>, vector<128x128xbf16>
    %cst_19 = arith.constant dense<0.000000e+00> : vector<16x128xf32>
    %16 = tpu.matmul %14, %15, %cst_19 {dimension_numbers = #tpu.dot_dimension_numbers<[1], [0], [0], [1], [0, 0, 1, 1], [], []>} : vector<16x128xbf16>, vector<128x128xbf16>, vector<16x128xf32> -> vector<16x128xf32>
    %c0_20 = arith.constant 0 : index
    %c0_21 = arith.constant 0 : index
    %17 = vector.load %arg5[%c0_20, %c0_21] : memref<1x128xf32, #tpu.memory_space<vmem>>, vector<1x128xf32>
    %18 = vector.broadcast %17 : vector<1x128xf32> to vector<16x128xf32>
    %19 = arith.addf %16, %18 : vector<16x128xf32>
    %c0_22 = arith.constant 0 : index
    %c0_23 = arith.constant 0 : index
    %20 = vector.load %arg6[%c0_22, %c0_23] : memref<16x128xf32, #tpu.memory_space<vmem>>, vector<16x128xf32>
    tpu.vector_store %arg6[%c0_22, %c0_23], %19 {strides = array<i32>} : memref<16x128xf32, #tpu.memory_space<vmem>>, vector<16x128xf32>,
    return
  }
  func.func @transform_0(%arg0: i32) -> (i32, i32) {
    %c0_i32 = arith.constant 0 : i32
    %c0_i32_0 = arith.constant 0 : i32
    return %arg0, %c0_i32 : i32, i32
  }
  func.func @transform_1(%arg0: i32) -> (i32, i32, i32) {
    %c0_i32 = arith.constant 0 : i32
    %c0_i32_0 = arith.constant 0 : i32
    %c0_i32_1 = arith.constant 0 : i32
    return %arg0, %c0_i32, %c0_i32_0 : i32, i32, i32
  }
  func.func @transform_2(%arg0: i32) -> (i32, i32, i32) {
    %c0_i32 = arith.constant 0 : i32
    %c0_i32_0 = arith.constant 0 : i32
    %c0_i32_1 = arith.constant 0 : i32
    return %arg0, %c0_i32, %c0_i32_0 : i32, i32, i32
  }
  func.func @transform_3(%arg0: i32) -> (i32, i32) {
    %c0_i32 = arith.constant 0 : i32
    %c0_i32_0 = arith.constant 0 : i32
    %c0_i32_1 = arith.constant 0 : i32
    return %c0_i32, %c0_i32_0 : i32, i32
  }
  func.func @transform_4(%arg0: i32) -> (i32, i32) {
    %c0_i32 = arith.constant 0 : i32
    %c0_i32_0 = arith.constant 0 : i32
    %c0_i32_1 = arith.constant 0 : i32
    return %c0_i32, %c0_i32_0 : i32, i32
  }
  func.func @transform_5(%arg0: i32) -> (i32, i32) {
    %c0_i32 = arith.constant 0 : i32
    %c0_i32_0 = arith.constant 0 : i32
    return %arg0, %c0_i32 : i32, i32
  }
}

</mosaic_0001>

<llo_original>
// kernel: tpu_custom_call.1
$region0: #{tpu_custom_call.1}
  #allocation0 [shape = 'u32[]', space=smem, size = 0x4, offset = 0x4, fixed_abs, tag = 'smem constant byte address 0x4 - core index']
  #allocation1 [shape = 'u32[72,128]{1,0:T(1,128)}', space=vmem, size = 0x9000, scoped, tag = 'internal scratch']
  #allocation2 [shape = 'bf16[16,128]{1,0:T(8,128)(2,1)}', space=vmem, size = 0x1000, scoped, tag = 'scratch operand']
  %s0 = inlined_call_operand.hbm [shape: bf16[16,32], index: 0, kind: input, shape index: {}]
  %s1 = inlined_call_operand.hbm [shape: bf16[16,8,32], index: 1, kind: input, shape index: {}]
  %s2 = inlined_call_operand.hbm [shape: bf16[16,8,32], index: 2, kind: input, shape index: {}]
  %s3 = inlined_call_operand.hbm [shape: bf16[128,128], index: 3, kind: input, shape index: {}]
  %s4 = inlined_call_operand.vmem [shape: f32[1,128], index: 4, kind: input, shape index: {}]
  %s5 = inlined_call_operand.hbm [shape: f32[16,128], index: 5, kind: output, shape index: {}]
  %s6 = sld [smem:[#allocation0]]
  $region46: #{tpu_custom_call.1} parent=0
    _
  %s8 = ssub.s32 1, %s6
  %s9 = scalar_select 0, %s8, %s6
  $region1: #{tpu_custom_call.1} parent=0
    #allocation3 [shape = 'u8[4096]{0}', space=vmem, size = 0x1000, scoped, tag = 'input window, operand 0, single buffered']
    #allocation4 [shape = 's32[1]{0}', space=sflag, size = 0x4, scoped, tag = 'scoped memory for tpu_custom_call.1']
    #allocation5 [shape = 's32[1]{0}', space=sflag, size = 0x4, scoped, tag = 'scoped memory for tpu_custom_call.1']
    #allocation6 [shape = 'u8[32768]{0}', space=vmem, size = 0x8000, scoped, tag = 'input window, operand 1, single buffered']
    #allocation7 [shape = 's32[1]{0}', space=sflag, size = 0x4, scoped, tag = 'scoped memory for tpu_custom_call.1']
    #allocation8 [shape = 'u8[32768]{0}', space=vmem, size = 0x8000, scoped, tag = 'input window, operand 2, single buffered']
    #allocation9 [shape = 'u8[32768]{0}', space=vmem, size = 0x8000, scoped, tag = 'input window, operand 3, single buffered']
    #allocation10 [shape = 's32[1]{0}', space=sflag, size = 0x4, scoped, tag = 'scoped memory for tpu_custom_call.1']
    #allocation11 [shape = 'u8[8192]{0}', space=vmem, size = 0x2000, scoped, tag = 'output window, operand 0, single buffered']
    %10 = vsyncpa [#allocation4], 0
    %11 = vsyncpa [#allocation7], 0
    %12 = vsyncpa [#allocation10], 0
    %13 = vsyncpa [#allocation5], 0
    // Predicated region
    $region2: #{tpu_custom_call.1} parent=1 // pred_check
      _
    $region3: #{tpu_custom_call.1} parent=1 // pred_check_branch
      %15 = sbr.rel (0) target = $region5
    $region4: #{tpu_custom_call.1} parent=1 // pred_region
      %17 = vsyncadd [#allocation4], 0
      %s18 = sshll.u32 %s0, 4
      %s19 = int_to_ptr.hbm [resolvable:$true] %s18
      %s20 = sshll.u32 [#allocation3], 4
      %s21 = int_to_ptr.vmem [resolvable:$true] %s20
      %26 = dma.hbm_to_vmem [thread:$0]  %s19, 128, %s21, [#allocation4], 64, 64, 4
    $region5: #{tpu_custom_call.1} parent=1 // pred_fallthru
      _
    // Predicated region
    $region6: #{tpu_custom_call.1} parent=1 // pred_check
      _
    $region7: #{tpu_custom_call.1} parent=1 // pred_check_branch
      %28 = sbr.rel (0) target = $region9
    $region8: #{tpu_custom_call.1} parent=1 // pred_region
      %30 = vsyncadd [#allocation7], 0
      %s31 = sshll.u32 %s1, 4
      %s32 = int_to_ptr.hbm [resolvable:$true] %s31
      %s33 = sshll.u32 [#allocation6], 4
      %s34 = int_to_ptr.vmem [resolvable:$true] %s33
      %39 = dma.hbm_to_vmem [thread:$0]  %s32, 1024, %s34, [#allocation7], 64, 64, 4
    $region9: #{tpu_custom_call.1} parent=1 // pred_fallthru
      _
    // Predicated region
    $region10: #{tpu_custom_call.1} parent=1 // pred_check
      _
    $region11: #{tpu_custom_call.1} parent=1 // pred_check_branch
      %41 = sbr.rel (0) target = $region13
    $region12: #{tpu_custom_call.1} parent=1 // pred_region
      %43 = vsyncadd [#allocation7], 0
      %s44 = sshll.u32 %s2, 4
      %s45 = int_to_ptr.hbm [resolvable:$true] %s44
      %s46 = sshll.u32 [#allocation8], 4
      %s47 = int_to_ptr.vmem [resolvable:$true] %s46
      %52 = dma.hbm_to_vmem [thread:$0]  %s45, 1024, %s47, [#allocation7], 64, 64, 4
    $region13: #{tpu_custom_call.1} parent=1 // pred_fallthru
      _
    // Predicated region
    $region14: #{tpu_custom_call.1} parent=1 // pred_check
      _
    $region15: #{tpu_custom_call.1} parent=1 // pred_check_branch
      %54 = sbr.rel (0) target = $region17
    $region16: #{tpu_custom_call.1} parent=1 // pred_region
      %56 = vsyncadd [#allocation10], 0
      %s57 = sshll.u32 %s3, 4
      %s58 = int_to_ptr.hbm [resolvable:$true] %s57
      %s59 = sshll.u32 [#allocation9], 4
      %s60 = int_to_ptr.vmem [resolvable:$true] %s59
      %65 = dma.hbm_to_vmem [thread:$0]  %s58, 1024, %s60, [#allocation10], 64, 64, 4
    $region17: #{tpu_custom_call.1} parent=1 // pred_fallthru
      _
    // Predicated region
    $region18: #{tpu_custom_call.1} parent=1 // pred_check
      _
    $region19: #{tpu_custom_call.1} parent=1 // pred_check_branch
      %67 = sbr.rel (0) target = $region21
    $region20: #{tpu_custom_call.1} parent=1 // pred_region
      _
    $region21: #{tpu_custom_call.1} parent=1 // pred_fallthru
      _
    // Predicated region
    $region22: #{tpu_custom_call.1} parent=1 // pred_check
      _
    $region23: #{tpu_custom_call.1} parent=1 // pred_check_branch
      %69 = sbr.rel (0) target = $region25
    $region24: #{tpu_custom_call.1} parent=1 // pred_region
      %71 = dma.done [#allocation4], 128
    $region25: #{tpu_custom_call.1} parent=1 // pred_fallthru
      _
    // Predicated region
    $region26: #{tpu_custom_call.1} parent=1 // pred_check
      _
    $region27: #{tpu_custom_call.1} parent=1 // pred_check_branch
      %73 = sbr.rel (0) target = $region29
    $region28: #{tpu_custom_call.1} parent=1 // pred_region
      %75 = dma.done [#allocation7], 1024
    $region29: #{tpu_custom_call.1} parent=1 // pred_fallthru
      _
    // Predicated region
    $region30: #{tpu_custom_call.1} parent=1 // pred_check
      _
    $region31: #{tpu_custom_call.1} parent=1 // pred_check_branch
      %77 = sbr.rel (0) target = $region33
    $region32: #{tpu_custom_call.1} parent=1 // pred_region
      %79 = dma.done [#allocation7], 1024
    $region33: #{tpu_custom_call.1} parent=1 // pred_fallthru
      _
    // Predicated region
    $region34: #{tpu_custom_call.1} parent=1 // pred_check
      _
    $region35: #{tpu_custom_call.1} parent=1 // pred_check_branch
      %81 = sbr.rel (0) target = $region37
    $region36: #{tpu_custom_call.1} parent=1 // pred_region
      %83 = dma.done [#allocation10], 1024
    $region37: #{tpu_custom_call.1} parent=1 // pred_fallthru
      _
    %v85 = vld [vmem:[#allocation6] sm:$0xf]
    %v86 = vld [vmem:[#allocation6 + $0x4] sm:$0xf]
    %v87 = vld [vmem:[#allocation6 + $0x8] sm:$0xf]
    %v88 = vld [vmem:[#allocation6 + $0xc] sm:$0xf]
    %v89 = vld [vmem:[#allocation6 + $0x10] sm:$0xf]
    %v90 = vld [vmem:[#allocation6 + $0x14] sm:$0xf]
    %v91 = vld [vmem:[#allocation6 + $0x18] sm:$0xf]
    %v92 = vld [vmem:[#allocation6 + $0x1c] sm:$0xf]
    %v93 = vld [vmem:[#allocation6 + $0x20] sm:$0xf]
    %v94 = vld [vmem:[#allocation6 + $0x24] sm:$0xf]
    %v95 = vld [vmem:[#allocation6 + $0x28] sm:$0xf]
    %v96 = vld [vmem:[#allocation6 + $0x2c] sm:$0xf]
    %v97 = vld [vmem:[#allocation6 + $0x30] sm:$0xf]
    %v98 = vld [vmem:[#allocation6 + $0x34] sm:$0xf]
    %v99 = vld [vmem:[#allocation6 + $0x38] sm:$0xf]
    %v100 = vld [vmem:[#allocation6 + $0x3c] sm:$0xf]
    %v101 = vunpack.c.l.bf16 %v85
    %v102 = vunpack.c.l.bf16 %v86
    %v103 = vunpack.c.l.bf16 %v87
    %v104 = vunpack.c.l.bf16 %v88
    %v105 = vunpack.c.l.bf16 %v89
    %v106 = vunpack.c.l.bf16 %v90
    %v107 = vunpack.c.l.bf16 %v91
    %v108 = vunpack.c.l.bf16 %v92
    %v109 = vunpack.c.l.bf16 %v93
    %v110 = vunpack.c.l.bf16 %v94
    %v111 = vunpack.c.l.bf16 %v95
    %v112 = vunpack.c.l.bf16 %v96
    %v113 = vunpack.c.l.bf16 %v97
    %v114 = vunpack.c.l.bf16 %v98
    %v115 = vunpack.c.l.bf16 %v99
    %v116 = vunpack.c.l.bf16 %v100
    %vm117 = vcmask 261120
    %v118 = vsel %vm117, %v101, 0.0
    %v119 = vrot.slane %v118, 4
    %v120 = vadd.f32 %v118, %v119
    %v121 = vrot.slane %v120, 2
    %v122 = vadd.f32 %v120, %v121
    %v123 = vrot.slane %v122, 1
    %v124 = vadd.f32 %v122, %v123
    %v125 = vsel %vm117, %v102, 0.0
    %v126 = vrot.slane %v125, 4
    %v127 = vadd.f32 %v125, %v126
    %v128 = vrot.slane %v127, 2
    %v129 = vadd.f32 %v127, %v128
    %v130 = vrot.slane %v129, 1
    %v131 = vadd.f32 %v129, %v130
    %v132 = vsel %vm117, %v103, 0.0
    %v133 = vrot.slane %v132, 4
    %v134 = vadd.f32 %v132, %v133
    %v135 = vrot.slane %v134, 2
    %v136 = vadd.f32 %v134, %v135
    %v137 = vrot.slane %v136, 1
    %v138 = vadd.f32 %v136, %v137
    %v139 = vsel %vm117, %v104, 0.0
    %v140 = vrot.slane %v139, 4
    %v141 = vadd.f32 %v139, %v140
    %v142 = vrot.slane %v141, 2
    %v143 = vadd.f32 %v141, %v142
    %v144 = vrot.slane %v143, 1
    %v145 = vadd.f32 %v143, %v144
    %v146 = vsel %vm117, %v105, 0.0
    %v147 = vrot.slane %v146, 4
    %v148 = vadd.f32 %v146, %v147
    %v149 = vrot.slane %v148, 2
    %v150 = vadd.f32 %v148, %v149
    %v151 = vrot.slane %v150, 1
    %v152 = vadd.f32 %v150, %v151
    %v153 = vsel %vm117, %v106, 0.0
    %v154 = vrot.slane %v153, 4
    %v155 = vadd.f32 %v153, %v154
    %v156 = vrot.slane %v155, 2
    %v157 = vadd.f32 %v155, %v156
    %v158 = vrot.slane %v157, 1
    %v159 = vadd.f32 %v157, %v158
    %v160 = vsel %vm117, %v107, 0.0
    %v161 = vrot.slane %v160, 4
    %v162 = vadd.f32 %v160, %v161
    %v163 = vrot.slane %v162, 2
    %v164 = vadd.f32 %v162, %v163
    %v165 = vrot.slane %v164, 1
    %v166 = vadd.f32 %v164, %v165
    %v167 = vsel %vm117, %v108, 0.0
    %v168 = vrot.slane %v167, 4
    %v169 = vadd.f32 %v167, %v168
    %v170 = vrot.slane %v169, 2
    %v171 = vadd.f32 %v169, %v170
    %v172 = vrot.slane %v171, 1
    %v173 = vadd.f32 %v171, %v172
    %v174 = vsel %vm117, %v109, 0.0
    %v175 = vrot.slane %v174, 4
    %v176 = vadd.f32 %v174, %v175
    %v177 = vrot.slane %v176, 2
    %v178 = vadd.f32 %v176, %v177
    %v179 = vrot.slane %v178, 1
    %v180 = vadd.f32 %v178, %v179
    %v181 = vsel %vm117, %v110, 0.0
    %v182 = vrot.slane %v181, 4
    %v183 = vadd.f32 %v181, %v182
    %v184 = vrot.slane %v183, 2
    %v185 = vadd.f32 %v183, %v184
    %v186 = vrot.slane %v185, 1
    %v187 = vadd.f32 %v185, %v186
    %v188 = vsel %vm117, %v111, 0.0
    %v189 = vrot.slane %v188, 4
    %v190 = vadd.f32 %v188, %v189
    %v191 = vrot.slane %v190, 2
    %v192 = vadd.f32 %v190, %v191
    %v193 = vrot.slane %v192, 1
    %v194 = vadd.f32 %v192, %v193
    %v195 = vsel %vm117, %v112, 0.0
    %v196 = vrot.slane %v195, 4
    %v197 = vadd.f32 %v195, %v196
    %v198 = vrot.slane %v197, 2
    %v199 = vadd.f32 %v197, %v198
    %v200 = vrot.slane %v199, 1
    %v201 = vadd.f32 %v199, %v200
    %v202 = vsel %vm117, %v113, 0.0
    %v203 = vrot.slane %v202, 4
    %v204 = vadd.f32 %v202, %v203
    %v205 = vrot.slane %v204, 2
    %v206 = vadd.f32 %v204, %v205
    %v207 = vrot.slane %v206, 1
    %v208 = vadd.f32 %v206, %v207
    %v209 = vsel %vm117, %v114, 0.0
    %v210 = vrot.slane %v209, 4
    %v211 = vadd.f32 %v209, %v210
    %v212 = vrot.slane %v211, 2
    %v213 = vadd.f32 %v211, %v212
    %v214 = vrot.slane %v213, 1
    %v215 = vadd.f32 %v213, %v214
    %v216 = vsel %vm117, %v115, 0.0
    %v217 = vrot.slane %v216, 4
    %v218 = vadd.f32 %v216, %v217
    %v219 = vrot.slane %v218, 2
    %v220 = vadd.f32 %v218, %v219
    %v221 = vrot.slane %v220, 1
    %v222 = vadd.f32 %v220, %v221
    %v223 = vsel %vm117, %v116, 0.0
    %v224 = vrot.slane %v223, 4
    %v225 = vadd.f32 %v223, %v224
    %v226 = vrot.slane %v225, 2
    %v227 = vadd.f32 %v225, %v226
    %v228 = vrot.slane %v227, 1
    %v229 = vadd.f32 %v227, %v228
    %v230 = vld [vmem:[#allocation8] sm:$0xf]
    %v231 = vld [vmem:[#allocation8 + $0x4] sm:$0xf]
    %v232 = vld [vmem:[#allocation8 + $0x8] sm:$0xf]
    %v233 = vld [vmem:[#allocation8 + $0xc] sm:$0xf]
    %v234 = vld [vmem:[#allocation8 + $0x10] sm:$0xf]
    %v235 = vld [vmem:[#allocation8 + $0x14] sm:$0xf]
    %v236 = vld [vmem:[#allocation8 + $0x18] sm:$0xf]
    %v237 = vld [vmem:[#allocation8 + $0x1c] sm:$0xf]
    %v238 = vld [vmem:[#allocation8 + $0x20] sm:$0xf]
    %v239 = vld [vmem:[#allocation8 + $0x24] sm:$0xf]
    %v240 = vld [vmem:[#allocation8 + $0x28] sm:$0xf]
    %v241 = vld [vmem:[#allocation8 + $0x2c] sm:$0xf]
    %v242 = vld [vmem:[#allocation8 + $0x30] sm:$0xf]
    %v243 = vld [vmem:[#allocation8 + $0x34] sm:$0xf]
    %v244 = vld [vmem:[#allocation8 + $0x38] sm:$0xf]
    %v245 = vld [vmem:[#allocation8 + $0x3c] sm:$0xf]
    %v246 = vunpack.c.l.bf16 %v230
    %v247 = vunpack.c.l.bf16 %v231
    %v248 = vunpack.c.l.bf16 %v232
    %v249 = vunpack.c.l.bf16 %v233
    %v250 = vunpack.c.l.bf16 %v234
    %v251 = vunpack.c.l.bf16 %v235
    %v252 = vunpack.c.l.bf16 %v236
    %v253 = vunpack.c.l.bf16 %v237
    %v254 = vunpack.c.l.bf16 %v238
    %v255 = vunpack.c.l.bf16 %v239
    %v256 = vunpack.c.l.bf16 %v240
    %v257 = vunpack.c.l.bf16 %v241
    %v258 = vunpack.c.l.bf16 %v242
    %v259 = vunpack.c.l.bf16 %v243
    %v260 = vunpack.c.l.bf16 %v244
    %v261 = vunpack.c.l.bf16 %v245
    %v262 = vsel %vm117, %v246, 0.0
    %v263 = vrot.slane %v262, 4
    %v264 = vadd.f32 %v262, %v263
    %v265 = vrot.slane %v264, 2
    %v266 = vadd.f32 %v264, %v265
    %v267 = vrot.slane %v266, 1
    %v268 = vadd.f32 %v266, %v267
    %v269 = vsel %vm117, %v247, 0.0
    %v270 = vrot.slane %v269, 4
    %v271 = vadd.f32 %v269, %v270
    %v272 = vrot.slane %v271, 2
    %v273 = vadd.f32 %v271, %v272
    %v274 = vrot.slane %v273, 1
    %v275 = vadd.f32 %v273, %v274
    %v276 = vsel %vm117, %v248, 0.0
    %v277 = vrot.slane %v276, 4
    %v278 = vadd.f32 %v276, %v277
    %v279 = vrot.slane %v278, 2
    %v280 = vadd.f32 %v278, %v279
    %v281 = vrot.slane %v280, 1
    %v282 = vadd.f32 %v280, %v281
    %v283 = vsel %vm117, %v249, 0.0
    %v284 = vrot.slane %v283, 4
    %v285 = vadd.f32 %v283, %v284
    %v286 = vrot.slane %v285, 2
    %v287 = vadd.f32 %v285, %v286
    %v288 = vrot.slane %v287, 1
    %v289 = vadd.f32 %v287, %v288
    %v290 = vsel %vm117, %v250, 0.0
    %v291 = vrot.slane %v290, 4
    %v292 = vadd.f32 %v290, %v291
    %v293 = vrot.slane %v292, 2
    %v294 = vadd.f32 %v292, %v293
    %v295 = vrot.slane %v294, 1
    %v296 = vadd.f32 %v294, %v295
    %v297 = vsel %vm117, %v251, 0.0
    %v298 = vrot.slane %v297, 4
    %v299 = vadd.f32 %v297, %v298
    %v300 = vrot.slane %v299, 2
    %v301 = vadd.f32 %v299, %v300
    %v302 = vrot.slane %v301, 1
    %v303 = vadd.f32 %v301, %v302
    %v304 = vsel %vm117, %v252, 0.0
    %v305 = vrot.slane %v304, 4
    %v306 = vadd.f32 %v304, %v305
    %v307 = vrot.slane %v306, 2
    %v308 = vadd.f32 %v306, %v307
    %v309 = vrot.slane %v308, 1
    %v310 = vadd.f32 %v308, %v309
    %v311 = vsel %vm117, %v253, 0.0
    %v312 = vrot.slane %v311, 4
    %v313 = vadd.f32 %v311, %v312
    %v314 = vrot.slane %v313, 2
    %v315 = vadd.f32 %v313, %v314
    %v316 = vrot.slane %v315, 1
    %v317 = vadd.f32 %v315, %v316
    %v318 = vsel %vm117, %v254, 0.0
    %v319 = vrot.slane %v318, 4
    %v320 = vadd.f32 %v318, %v319
    %v321 = vrot.slane %v320, 2
    %v322 = vadd.f32 %v320, %v321
    %v323 = vrot.slane %v322, 1
    %v324 = vadd.f32 %v322, %v323
    %v325 = vsel %vm117, %v255, 0.0
    %v326 = vrot.slane %v325, 4
    %v327 = vadd.f32 %v325, %v326
    %v328 = vrot.slane %v327, 2
    %v329 = vadd.f32 %v327, %v328
    %v330 = vrot.slane %v329, 1
    %v331 = vadd.f32 %v329, %v330
    %v332 = vsel %vm117, %v256, 0.0
    %v333 = vrot.slane %v332, 4
    %v334 = vadd.f32 %v332, %v333
    %v335 = vrot.slane %v334, 2
    %v336 = vadd.f32 %v334, %v335
    %v337 = vrot.slane %v336, 1
    %v338 = vadd.f32 %v336, %v337
    %v339 = vsel %vm117, %v257, 0.0
    %v340 = vrot.slane %v339, 4
    %v341 = vadd.f32 %v339, %v340
    %v342 = vrot.slane %v341, 2
    %v343 = vadd.f32 %v341, %v342
    %v344 = vrot.slane %v343, 1
    %v345 = vadd.f32 %v343, %v344
    %v346 = vsel %vm117, %v258, 0.0
    %v347 = vrot.slane %v346, 4
    %v348 = vadd.f32 %v346, %v347
    %v349 = vrot.slane %v348, 2
    %v350 = vadd.f32 %v348, %v349
    %v351 = vrot.slane %v350, 1
    %v352 = vadd.f32 %v350, %v351
    %v353 = vsel %vm117, %v259, 0.0
    %v354 = vrot.slane %v353, 4
    %v355 = vadd.f32 %v353, %v354
    %v356 = vrot.slane %v355, 2
    %v357 = vadd.f32 %v355, %v356
    %v358 = vrot.slane %v357, 1
    %v359 = vadd.f32 %v357, %v358
    %v360 = vsel %vm117, %v260, 0.0
    %v361 = vrot.slane %v360, 4
    %v362 = vadd.f32 %v360, %v361
    %v363 = vrot.slane %v362, 2
    %v364 = vadd.f32 %v362, %v363
    %v365 = vrot.slane %v364, 1
    %v366 = vadd.f32 %v364, %v365
    %v367 = vsel %vm117, %v261, 0.0
    %v368 = vrot.slane %v367, 4
    %v369 = vadd.f32 %v367, %v368
    %v370 = vrot.slane %v369, 2
    %v371 = vadd.f32 %v369, %v370
    %v372 = vrot.slane %v371, 1
    %v373 = vadd.f32 %v371, %v372
    %374 = vst [vmem:[#allocation2] sm:$0xf] 0
    %375 = vst [vmem:[#allocation2 + $0x4] sm:$0xf] 0
    %v376 = vld [vmem:[#allocation3] sm:$0xf]
    %v377 = vld [vmem:[#allocation3 + $0x4] sm:$0xf]
    %vm378 = vcmask 257024
    %379 = vst.msk [vmem:[#allocation2] sm:$0xf] %vm378, %v376
    %380 = vst.msk [vmem:[#allocation2 + $0x4] sm:$0xf] %vm378, %v377
    %v381 = vpack.c.bf16 %v124, %v124
    %v382 = vpack.c.bf16 %v131, %v131
    %v383 = vpack.c.bf16 %v138, %v138
    %v384 = vpack.c.bf16 %v145, %v145
    %v385 = vpack.c.bf16 %v152, %v152
    %v386 = vpack.c.bf16 %v159, %v159
    %v387 = vpack.c.bf16 %v166, %v166
    %v388 = vpack.c.bf16 %v173, %v173
    %v389 = vpack.c.bf16 %v180, %v180
    %v390 = vpack.c.bf16 %v187, %v187
    %v391 = vpack.c.bf16 %v194, %v194
    %v392 = vpack.c.bf16 %v201, %v201
    %v393 = vpack.c.bf16 %v208, %v208
    %v394 = vpack.c.bf16 %v215, %v215
    %v395 = vpack.c.bf16 %v222, %v222
    %v396 = vpack.c.bf16 %v229, %v229
    %v413 = vunpack.c.l.b16 %v381
    %v414 = vunpack.c.l.b16 %v382
    %v415 = vunpack.c.l.b16 %v383
    %v416 = vunpack.c.l.b16 %v384
    %v417 = vunpack.c.l.b16 %v385
    %v418 = vunpack.c.l.b16 %v386
    %v419 = vunpack.c.l.b16 %v387
    %v420 = vunpack.c.l.b16 %v388
    %v421 = vunpack.c.l.b16 %v389
    %v422 = vunpack.c.l.b16 %v390
    %v423 = vunpack.c.l.b16 %v391
    %v424 = vunpack.c.l.b16 %v392
    %v425 = vunpack.c.l.b16 %v393
    %v426 = vunpack.c.l.b16 %v394
    %v427 = vunpack.c.l.b16 %v395
    %v428 = vunpack.c.l.b16 %v396
    %vm429 = vcmask 1041409
    %v430 = vsel %vm429, %v414, %v413
    %vm431 = vcmask 1042434
    %v432 = vsel %vm431, %v415, %v430
    %vm433 = vcmask 1043459
    %v434 = vsel %vm433, %v416, %v432
    %vm435 = vcmask 1044484
    %v436 = vsel %vm435, %v417, %v434
    %vm437 = vcmask 1045509
    %v438 = vsel %vm437, %v418, %v436
    %vm439 = vcmask 1046534
    %v440 = vsel %vm439, %v419, %v438
    %vm441 = vcmask 1047559
    %v442 = vsel %vm441, %v420, %v440
    %v443 = vsel %vm429, %v422, %v421
    %v444 = vsel %vm431, %v423, %v443
    %v445 = vsel %vm433, %v424, %v444
    %v446 = vsel %vm435, %v425, %v445
    %v447 = vsel %vm437, %v426, %v446
    %v448 = vsel %vm439, %v427, %v447
    %v449 = vsel %vm441, %v428, %v448
    %v450 = vpack.c.b16 %v442, %v442
    %v451 = vpack.c.b16 %v449, %v449
    %452 = vrot.lane.b32.xlu0 %v450, 32
    %v453 = vpop.permute.xlu0 %452
    %454 = vrot.lane.b32.xlu0 %v451, 32
    %v455 = vpop.permute.xlu0 %454
    %vm458 = vcmask 519424
    %459 = vst.msk [vmem:[#allocation2] sm:$0xf] %vm458, %v453
    %460 = vst.msk [vmem:[#allocation2 + $0x4] sm:$0xf] %vm458, %v455
    %v461 = vpack.c.bf16 %v268, %v268
    %v462 = vpack.c.bf16 %v275, %v275
    %v463 = vpack.c.bf16 %v282, %v282
    %v464 = vpack.c.bf16 %v289, %v289
    %v465 = vpack.c.bf16 %v296, %v296
    %v466 = vpack.c.bf16 %v303, %v303
    %v467 = vpack.c.bf16 %v310, %v310
    %v468 = vpack.c.bf16 %v317, %v317
    %v469 = vpack.c.bf16 %v324, %v324
    %v470 = vpack.c.bf16 %v331, %v331
    %v471 = vpack.c.bf16 %v338, %v338
    %v472 = vpack.c.bf16 %v345, %v345
    %v473 = vpack.c.bf16 %v352, %v352
    %v474 = vpack.c.bf16 %v359, %v359
    %v475 = vpack.c.bf16 %v366, %v366
    %v476 = vpack.c.bf16 %v373, %v373
    %v493 = vunpack.c.l.b16 %v461
    %v494 = vunpack.c.l.b16 %v462
    %v495 = vunpack.c.l.b16 %v463
    %v496 = vunpack.c.l.b16 %v464
    %v497 = vunpack.c.l.b16 %v465
    %v498 = vunpack.c.l.b16 %v466
    %v499 = vunpack.c.l.b16 %v467
    %v500 = vunpack.c.l.b16 %v468
    %v501 = vunpack.c.l.b16 %v469
    %v502 = vunpack.c.l.b16 %v470
    %v503 = vunpack.c.l.b16 %v471
    %v504 = vunpack.c.l.b16 %v472
    %v505 = vunpack.c.l.b16 %v473
    %v506 = vunpack.c.l.b16 %v474
    %v507 = vunpack.c.l.b16 %v475
    %v508 = vunpack.c.l.b16 %v476
    %v509 = vsel %vm429, %v494, %v493
    %v510 = vsel %vm431, %v495, %v509
    %v511 = vsel %vm433, %v496, %v510
    %v512 = vsel %vm435, %v497, %v511
    %v513 = vsel %vm437, %v498, %v512
    %v514 = vsel %vm439, %v499, %v513
    %v515 = vsel %vm441, %v500, %v514
    %v516 = vsel %vm429, %v502, %v501
    %v517 = vsel %vm431, %v503, %v516
    %v518 = vsel %vm433, %v504, %v517
    %v519 = vsel %vm435, %v505, %v518
    %v520 = vsel %vm437, %v506, %v519
    %v521 = vsel %vm439, %v507, %v520
    %v522 = vsel %vm441, %v508, %v521
    %v523 = vpack.c.b16 %v515, %v515
    %v524 = vpack.c.b16 %v522, %v522
    %525 = vrot.lane.b32.xlu0 %v523, 64
    %v526 = vpop.permute.xlu0 %525
    %527 = vrot.lane.b32.xlu0 %v524, 64
    %v528 = vpop.permute.xlu0 %527
    %vm531 = vcmask 781824
    %532 = vst.msk [vmem:[#allocation2] sm:$0xf] %vm531, %v526
    %533 = vst.msk [vmem:[#allocation2 + $0x4] sm:$0xf] %vm531, %v528
    %v534 = vld [vmem:[#allocation2] sm:$0xf]
    %v535 = vld [vmem:[#allocation2 + $0x4] sm:$0xf]
    %v536 = vld [vmem:[#allocation9] sm:$0xf]
    %v537 = vld [vmem:[#allocation9 + $0x4] sm:$0xf]
    %v538 = vld [vmem:[#allocation9 + $0x8] sm:$0xf]
    %v539 = vld [vmem:[#allocation9 + $0xc] sm:$0xf]
    %v540 = vld [vmem:[#allocation9 + $0x10] sm:$0xf]
    %v541 = vld [vmem:[#allocation9 + $0x14] sm:$0xf]
    %v542 = vld [vmem:[#allocation9 + $0x18] sm:$0xf]
    %v543 = vld [vmem:[#allocation9 + $0x1c] sm:$0xf]
    %v544 = vld [vmem:[#allocation9 + $0x20] sm:$0xf]
    %v545 = vld [vmem:[#allocation9 + $0x24] sm:$0xf]
    %v546 = vld [vmem:[#allocation9 + $0x28] sm:$0xf]
    %v547 = vld [vmem:[#allocation9 + $0x2c] sm:$0xf]
    %v548 = vld [vmem:[#allocation9 + $0x30] sm:$0xf]
    %v549 = vld [vmem:[#allocation9 + $0x34] sm:$0xf]
    %v550 = vld [vmem:[#allocation9 + $0x38] sm:$0xf]
    %v551 = vld [vmem:[#allocation9 + $0x3c] sm:$0xf]
    %v552 = vld [vmem:[%s4] sm:$0x1]
    %v554 = vperm.slane %v552, 0
    %v558 = vunpack.c.l.b16 %v534
    %v559 = vunpack.c.l.b16 %v535
    %v560 = vpack.c.b16 %v559, %v558
    %v578 = vunpack.c.l.b16 %v536
    %v579 = vunpack.c.l.b16 %v537
    %v580 = vunpack.c.l.b16 %v538
    %v581 = vunpack.c.l.b16 %v539
    %v582 = vunpack.c.l.b16 %v540
    %v583 = vunpack.c.l.b16 %v541
    %v584 = vunpack.c.l.b16 %v542
    %v585 = vunpack.c.l.b16 %v543
    %v586 = vunpack.c.l.b16 %v544
    %v587 = vunpack.c.l.b16 %v545
    %v588 = vunpack.c.l.b16 %v546
    %v589 = vunpack.c.l.b16 %v547
    %v590 = vunpack.c.l.b16 %v548
    %v591 = vunpack.c.l.b16 %v549
    %v592 = vunpack.c.l.b16 %v550
    %v593 = vunpack.c.l.b16 %v551
    %v594 = vpack.c.b16 %v579, %v578
    %v595 = vpack.c.b16 %v581, %v580
    %v596 = vpack.c.b16 %v583, %v582
    %v597 = vpack.c.b16 %v585, %v584
    %v598 = vpack.c.b16 %v587, %v586
    %v599 = vpack.c.b16 %v589, %v588
    %v600 = vpack.c.b16 %v591, %v590
    %v601 = vpack.c.b16 %v593, %v592
    %610 = vmatpush.bf16.msra.mxu0 %v601
    %611 = vmatpush.bf16.msra.mxu0 %v600
    %612 = vmatpush.bf16.msra.mxu0 %v599
    %613 = vmatpush.bf16.msra.mxu0 %v598
    %614 = vmatpush.bf16.msra.mxu0 %v597
    %615 = vmatpush.bf16.msra.mxu0 %v596
    %616 = vmatpush.bf16.msra.mxu0 %v595
    %617 = vmatpush.bf16.msra.mxu0 %v594
    %618 = vmatmul.bf16.gmra.mxu0 %v560
    %v619 = vpop.f32.mrf.mxu0
    %v620 = vadd.f32 %v554, %v619
    %v621 = vpop.f32.mrf.mxu0
    %v622 = vadd.f32 %v554, %v621
    %623 = vdwg.mxu0
    %624 = vst [vmem:[#allocation11] sm:$0xff] %v620
    %625 = vst [vmem:[#allocation11 + $0x8] sm:$0xff] %v622
    // Predicated region
    $region38: #{tpu_custom_call.1} parent=1 // pred_check
      _
    $region39: #{tpu_custom_call.1} parent=1 // pred_check_branch
      %627 = sbr.rel (0) target = $region41
    $region40: #{tpu_custom_call.1} parent=1 // pred_region
      %629 = vsyncadd [#allocation5], 0
      %s630 = sshll.u32 [#allocation11], 4
      %s631 = int_to_ptr.vmem [resolvable:$true] %s630
      %s632 = sshll.u32 %s5, 4
      %s633 = int_to_ptr.hbm [resolvable:$true] %s632
      %638 = dma.vmem_to_hbm [thread:$0]  %s631, 256, %s633, [#allocation5], 128, 128, 8
    $region41: #{tpu_custom_call.1} parent=1 // pred_fallthru
      _
    // Predicated region
    $region42: #{tpu_custom_call.1} parent=1 // pred_check
      _
    $region43: #{tpu_custom_call.1} parent=1 // pred_check_branch
      %640 = sbr.rel (0) target = $region45
    $region44: #{tpu_custom_call.1} parent=1 // pred_region
      %642 = dma.done [#allocation5], 256
    $region45: #{tpu_custom_call.1} parent=1 // pred_fallthru
      _
    %643 = vsyncpa [#allocation4], 1
    %644 = vsyncpa [#allocation7], 1
    %645 = vsyncpa [#allocation10], 1
    %646 = vsyncpa [#allocation5], 1

</llo_original>
